<compile_context>
chip_gen: v7x
topology: tpu7x:2x2x1
jax: 0.10.0
libtpu: 0.0.40
codegen_flags: <defaults>
</compile_context>

<pallas_src>
import jax
import jax.numpy as jnp
from jax.experimental import pallas as pl
from jax.experimental.pallas import tpu as pltpu

_LANE = 128
_TARGET_BLOCK_BYTES = 4 * 1024 * 1024   # ~4 MiB per x/out block (near HBM roofline)
_VMEM_LIMIT_BYTES = 40 * 1024 * 1024    # fits v5e/v6e (128 MiB) and v7x (64 MiB)


def _round_up(n: int, m: int) -> int:
    return ((n + m - 1) // m) * m


def _pos_enc_kernel(x_ref, pe_ref, o_ref):
    # x_ref / o_ref : (TB, tile_rows, cols) block covering TB batch elements
    # pe_ref        : (tile_rows, cols) shared block, broadcast over the batch axis
    o_ref[...] = (x_ref[...] + pe_ref[...]).astype(o_ref.dtype)


def positional_encoding(x: jax.Array, pe: jax.Array) -> jax.Array:
    """x: (B, T, D), pe: (1, max_len, D)  ->  (B, T, D) = x + pe[:, :T, :]."""
    B, T, D = x.shape
    max_len = pe.shape[1]
    if T > max_len:
        raise ValueError(f"input length {T} exceeds max_len {max_len}.")

    # Match x's dtype (PE is tiny: casting it is negligible HBM traffic and
    # halves the PE stream when x is bf16 and PE is stored f32).
    pe = pe.astype(x.dtype)

    itemsize = jnp.dtype(x.dtype).itemsize
    # Packed sublane granule: 8 rows for 4-byte dtypes, 16 for bf16/fp16, 32 for int8/fp8.
    granule = max(8, 32 // itemsize)

    # ---- choose a lane-dense 2-D-per-batch view ---------------------------
    if D % _LANE == 0:
        rows, cols, pe_rows = T, D, max_len                       # already lane-dense
    elif (T * D) % _LANE == 0 and (max_len * D) % _LANE == 0:
        rows, cols, pe_rows = (T * D) // _LANE, _LANE, (max_len * D) // _LANE
    else:
        # Correct fallback (last dim not a multiple of 128 -> masked vst.msk stores).
        rows, cols, pe_rows = T, D, max_len

    x_view = x.reshape(B, rows, cols)      # contiguous reshape: no HBM copy
    pe_view = pe.reshape(pe_rows, cols)    # full table; BlockSpec selects rows

    # ---- tile selection ----------------------------------------------------
    slab_bytes = rows * cols * itemsize    # one batch element's slab
    if slab_bytes >= _TARGET_BLOCK_BYTES:
        # Big per-batch slab: tile rows within one batch element.
        TB = 1
        tile_rows = max(
            granule,
            (_TARGET_BLOCK_BYTES // (cols * itemsize)) // granule * granule,
        )
        tile_rows = min(tile_rows, _round_up(rows, granule))
    else:
        # Small per-batch slab (typical ViT): take all rows, block TB batches.
        tile_rows = _round_up(rows, granule)
        tile_bytes = max(tile_rows * cols * itemsize, 1)
        TB = min(B, max(1, _TARGET_BLOCK_BYTES // tile_bytes))

    grid_r = pl.cdiv(rows, tile_rows)
    grid_b = pl.cdiv(B, TB)

    # Megacore nudge (v7x has 2 TensorCores): keep >= 2 grid points on a
    # parallel axis whenever the problem allows it.
    if grid_r * grid_b < 2:
        if B >= 2:
            TB = pl.cdiv(B, 2)
            grid_b = pl.cdiv(B, TB)
        elif rows > granule:
            tile_rows = _round_up(pl.cdiv(rows, 2), granule)
            grid_r = pl.cdiv(rows, tile_rows)

    out = pl.pallas_call(
        _pos_enc_kernel,
        out_shape=jax.ShapeDtypeStruct((B, rows, cols), x.dtype),
        grid_spec=pltpu.PrefetchScalarGridSpec(
            num_scalar_prefetch=0,
            # Batch axis innermost: the PE block index is constant along it,
            # so the PE tile stays resident in VMEM across batch tiles.
            grid=(grid_r, grid_b),
            in_specs=[
                pl.BlockSpec((TB, tile_rows, cols), lambda i, b: (b, i, 0)),  # x
                pl.BlockSpec((tile_rows, cols), lambda i, b: (i, 0)),         # PE (shared)
            ],
            out_specs=pl.BlockSpec((TB, tile_rows, cols), lambda i, b: (b, i, 0)),
        ),
        compiler_params=pltpu.CompilerParams(
            dimension_semantics=("parallel", "parallel"),
            vmem_limit_bytes=_VMEM_LIMIT_BYTES,
        ),
        # Donate x's HBM buffer as the output.  Callers must also donate x at
        # the jit boundary (donate_argnums) for the copy to actually be elided.
        input_output_aliases={0: 0},
        cost_estimate=pl.CostEstimate(
            flops=B * T * D,
            transcendentals=0,
            bytes_accessed=(2 * B * T * D + T * D) * itemsize,
        ),
    )(x_view, pe_view)

    return out.reshape(B, T, D)


if __name__ == "__main__":
    key = jax.random.PRNGKey(0)
    kx, kpe, kx2, kpe2, kx3, kpe3 = jax.random.split(key, 6)

    # 1) Main check: module-demo shapes, f32, lane-dense path (T*D and
    #    max_len*D are multiples of 128), batch-blocked grid.
    B, T, D, max_len = 2, 8, 32, 16
    x = jax.random.normal(kx, (B, T, D), dtype=jnp.float32)
    pe = jax.random.normal(kpe, (1, max_len, D), dtype=jnp.float32)
    ref = x + pe[:, :T, :]
    out = jax.block_until_ready(positional_encoding(x, pe))
    assert out.shape == (B, T, D)
    assert jnp.allclose(out, ref, atol=1e-6), "mismatch (lane-dense f32 path)"

    # 2) Fallback path: D not a multiple of 128 and T*D not a multiple of 128
    #    -> natural layout, padded trailing row tile, masked stores.
    B2, T2, D2, max_len2 = 2, 10, 48, 16
    x2 = jax.random.normal(kx2, (B2, T2, D2), dtype=jnp.float32)
    pe2 = jax.random.normal(kpe2, (1, max_len2, D2), dtype=jnp.float32)
    ref2 = x2 + pe2[:, :T2, :]
    out2 = jax.block_until_ready(positional_encoding(x2, pe2))
    assert out2.shape == (B2, T2, D2)
    assert jnp.allclose(out2, ref2, atol=1e-6), "mismatch (fallback path)"

    # 3) bf16 path with a PE table stored in f32 (dtype-mismatch handling),
    #    bf16 sublane granule (16), odd batch -> partial trailing batch tile.
    B3, T3, D3, max_len3 = 3, 8, 32, 64
    x3 = jax.random.normal(kx3, (B3, T3, D3), dtype=jnp.bfloat16)
    pe3 = jax.random.normal(kpe3, (1, max_len3, D3), dtype=jnp.float32)
    ref3 = x3 + pe3[:, :T3, :].astype(jnp.bfloat16)
    out3 = jax.block_until_ready(positional_encoding(x3, pe3))
    assert out3.shape == (B3, T3, D3)
    assert jnp.allclose(out3.astype(jnp.float32), ref3.astype(jnp.float32),
                        atol=1e-2), "mismatch (bf16 path)"

    print("KERNEL_OK")
</pallas_src>

<mosaic_0001>
module attributes {stable_mosaic.version = 11 : i64} {
  func.func @_pos_enc_kernel(%arg0: i32, %arg1: i32, %arg2: memref<1x8x128xf32, #tpu.memory_space<vmem>>, %arg3: memref<8x128xf32, #tpu.memory_space<vmem>>, %arg4: memref<1x8x128xf32, #tpu.memory_space<vmem>>) attributes {dimension_semantics = [#tpu.dimension_semantics<parallel>, #tpu.dimension_semantics<parallel>], iteration_bounds = array<i64: 1, 2>, scalar_prefetch = 0 : i64, scratch_operands = 0 : i64, tpu.core_type = #tpu.core_type<tc>, window_params = [{transform_indices = @transform_0, window_bounds = array<i64: 1, 8, 128>}, {transform_indices = @transform_1, window_bounds = array<i64: 8, 128>}, {transform_indices = @transform_2, window_bounds = array<i64: 1, 8, 128>}]} {
    %c0 = arith.constant 0 : index
    %c0_0 = arith.constant 0 : index
    %c0_1 = arith.constant 0 : index
    %0 = vector.load %arg2[%c0, %c0_0, %c0_1] : memref<1x8x128xf32, #tpu.memory_space<vmem>>, vector<1x8x128xf32>
    %c0_2 = arith.constant 0 : index
    %c0_3 = arith.constant 0 : index
    %1 = vector.load %arg3[%c0_2, %c0_3] : memref<8x128xf32, #tpu.memory_space<vmem>>, vector<8x128xf32>
    %2 = vector.shape_cast %1 : vector<8x128xf32> to vector<1x8x128xf32>
    %3 = arith.addf %0, %2 : vector<1x8x128xf32>
    %c0_4 = arith.constant 0 : index
    %c0_5 = arith.constant 0 : index
    %c0_6 = arith.constant 0 : index
    %4 = vector.load %arg4[%c0_4, %c0_5, %c0_6] : memref<1x8x128xf32, #tpu.memory_space<vmem>>, vector<1x8x128xf32>
    tpu.vector_store %arg4[%c0_4, %c0_5, %c0_6], %3 {strides = array<i32>} : memref<1x8x128xf32, #tpu.memory_space<vmem>>, vector<1x8x128xf32>,
    return
  }
  func.func @transform_0(%arg0: i32, %arg1: i32) -> (i32, i32, i32) {
    %c0_i32 = arith.constant 0 : i32
    %c0_i32_0 = arith.constant 0 : i32
    return %arg1, %arg0, %c0_i32 : i32, i32, i32
  }
  func.func @transform_1(%arg0: i32, %arg1: i32) -> (i32, i32) {
    %c0_i32 = arith.constant 0 : i32
    %c0_i32_0 = arith.constant 0 : i32
    return %arg0, %c0_i32 : i32, i32
  }
  func.func @transform_2(%arg0: i32, %arg1: i32) -> (i32, i32, i32) {
    %c0_i32 = arith.constant 0 : i32
    %c0_i32_0 = arith.constant 0 : i32
    return %arg1, %arg0, %c0_i32 : i32, i32, i32
  }
}

</mosaic_0001>

<llo_original>
// kernel: tpu_custom_call.1
$region0: #{tpu_custom_call.1}
  #allocation0 [shape = 'u32[]', space=smem, size = 0x4, offset = 0x4, fixed_abs, tag = 'smem constant byte address 0x4 - core index']
  #allocation1 [shape = 'u32[144,128]{1,0:T(1,128)}', space=vmem, size = 0x12000, scoped, tag = 'internal scratch']
  %s0 = inlined_call_operand.hbm [shape: f32[2,2,128], index: 0, kind: input, shape index: {}, may-alias: {0,2}]
  %s1 = inlined_call_operand.vmem [shape: f32[4,128], index: 1, kind: input, shape index: {}]
  %s2 = inlined_call_operand.hbm [shape: f32[2,2,128], index: 2, kind: output, shape index: {}, may-alias: {0,2}]
  %s3 = sld [smem:[#allocation0]]
  $region45: #{tpu_custom_call.1} parent=0
    _
  %s5 = ssub.s32 1, %s3
  %s6 = scalar_select 0, %s5, %s3
  $region1: #{tpu_custom_call.1} parent=0
    #allocation2 [shape = 'u8[8192]{0}', space=vmem, size = 0x2000, scoped, tag = 'input window, operand 0']
    #allocation3 [shape = 's32[2]{0}', space=sflag, size = 0x8, scoped, tag = 'scoped memory for tpu_custom_call.1']
    #allocation4 [shape = 's32[2]{0}', space=sflag, size = 0x8, scoped, tag = 'scoped memory for tpu_custom_call.1']
    #allocation5 [shape = 'u8[8192]{0}', space=vmem, size = 0x2000, scoped, tag = 'output window, operand 0']
    %7 = vsyncpa [#allocation3], 0
    %s8 = scalar_lea.sflag [#allocation3], 1
    %9 = vsyncpa %s8, 0
    %10 = vsyncpa [#allocation4], 0
    %s11 = scalar_lea.sflag [#allocation4], 1
    %12 = vsyncpa %s11, 0
    loop: start=0, step=1, limit=4
    $region2: #{tpu_custom_call.1} parent=1 // loop_pre_header
      _
    $region3: #{tpu_custom_call.1} parent=1 // loop_header
      %s14 = sphi 0, %s18
      %p15 = scmp.ge.s32.totalorder %s14, 4
      %s21 = sphi 0, %s33
      %s22 = sphi 0, %s29
      %s23 = sphi 0, %s21
      %s24 = sphi 0, %s22
      %s25 = sphi 0, %s23
      %s26 = sphi 0, %s24
      %s38 = sphi 0, %s40
      %s41 = sphi 0, %s38
      %s42 = sphi 0, %s41
      %s58 = sphi 0, %s42
      %s64 = sphi 0, %s66
      %s67 = sphi 0, %s64
      %s68 = sphi 0, %s67
      %s84 = sphi 0, %s68
      %s92 = sphi 0, %s94
      %s95 = sphi 0, %s92
      %s96 = sphi 0, %s95
      %s112 = sphi 0, %s96
    $region4: #{tpu_custom_call.1} parent=1 // loop_header_branch
      %17 = sbr.rel (%p15) target = $region8
    $region5: #{tpu_custom_call.1} parent=1 // loop_body
      %s19 = ssub.s32 %s14, 1
      %s20 = ssub.s32 %s14, 2
      %s27 = sadd.s32 1, %s22
      %p28 = scmp.ge.s32.totalorder %s27, 2
      %s29 = scalar_select %p28, 0, %s27
      %s30 = sadd.s32 1, %s21
      %s31 = scalar_select %p28, %s30, %s21
      %p32 = scmp.ge.s32.totalorder %s31, 1
      %s33 = scalar_select %p32, 0, %s31
      %s34 = ssub.s32 %s22, %s29
      %s35 = ssub.s32 %s21, %s33
      %s36 = sor.u32 %s34, %s35
      %p37 = scmp.eq.s32.totalorder %s36, 0
      %s39 = sadd.s32 %s38, 1
      %s40 = scalar_select %p37, %s38, %s39
      %p43 = pneg %p37
      %p44 = scmp.eq.s32.totalorder %s14, 1
      %p45 = por %p43, %p44
      %p46 = scmp.ne.s32.totalorder %s38, %s41
      %p47 = scmp.eq.s32.totalorder %s14, 0
      %p48 = por %p46, %p47
      %p49 = scmp.ne.s32.totalorder %s38, %s41
      %p50 = scmp.eq.s32.totalorder %s19, 1
      %p51 = por %p49, %p50
      %p52 = scmp.ne.s32.totalorder %s41, %s42
      %p53 = scmp.eq.s32.totalorder %s19, 0
      %p54 = por %p52, %p53
      %p55 = scmp.ne.s32.totalorder %s41, %s42
      %p56 = scmp.eq.s32.totalorder %s20, 1
      %p57 = por %p55, %p56
      %p59 = scmp.ne.s32.totalorder %s42, %s58
      %p60 = scmp.eq.s32.totalorder %s20, 0
      %p61 = por %p59, %p60
      %s62 = ssub.s32 %s21, %s33
      %p63 = scmp.eq.s32.totalorder %s62, 0
      %s65 = sadd.s32 %s64, 1
      %s66 = scalar_select %p63, %s64, %s65
      %p69 = pneg %p63
      %p70 = scmp.eq.s32.totalorder %s14, 1
      %p71 = por %p69, %p70
      %p72 = scmp.ne.s32.totalorder %s64, %s67
      %p73 = scmp.eq.s32.totalorder %s14, 0
      %p74 = por %p72, %p73
      %p75 = scmp.ne.s32.totalorder %s64, %s67
      %p76 = scmp.eq.s32.totalorder %s19, 1
      %p77 = por %p75, %p76
      %p78 = scmp.ne.s32.totalorder %s67, %s68
      %p79 = scmp.eq.s32.totalorder %s19, 0
      %p80 = por %p78, %p79
      %p81 = scmp.ne.s32.totalorder %s67, %s68
      %p82 = scmp.eq.s32.totalorder %s20, 1
      %p83 = por %p81, %p82
      %p85 = scmp.ne.s32.totalorder %s68, %s84
      %p86 = scmp.eq.s32.totalorder %s20, 0
      %p87 = por %p85, %p86
      %s88 = ssub.s32 %s22, %s29
      %s89 = ssub.s32 %s21, %s33
      %s90 = sor.u32 %s88, %s89
      %p91 = scmp.eq.s32.totalorder %s90, 0
      %s93 = sadd.s32 %s92, 1
      %s94 = scalar_select %p91, %s92, %s93
      %p97 = pneg %p91
      %p98 = scmp.eq.s32.totalorder %s14, 1
      %p99 = por %p97, %p98
      %p100 = scmp.ne.s32.totalorder %s92, %s95
      %p101 = scmp.eq.s32.totalorder %s14, 0
      %p102 = por %p100, %p101
      %p103 = scmp.ne.s32.totalorder %s92, %s95
      %p104 = scmp.eq.s32.totalorder %s19, 1
      %p105 = por %p103, %p104
      %p106 = scmp.ne.s32.totalorder %s95, %s96
      %p107 = scmp.eq.s32.totalorder %s19, 0
      %p108 = por %p106, %p107
      %p109 = scmp.ne.s32.totalorder %s95, %s96
      %p110 = scmp.eq.s32.totalorder %s20, 1
      %p111 = por %p109, %p110
      %p113 = scmp.ne.s32.totalorder %s96, %s112
      %p114 = scmp.eq.s32.totalorder %s20, 0
      %p115 = por %p113, %p114
      %p116 = scmp.le.s32.totalorder 1, %s14
      %p117 = scmp.lt.s32.totalorder %s14, 3
      %p118 = pnand %p116, %p117
      %p119 = pneg %p118
      // Predicated region
      $region9: #{tpu_custom_call.1} parent=5 // pred_check
        _
      $region10: #{tpu_custom_call.1} parent=5 // pred_check_branch
        %121 = sbr.rel (%p118) target = $region12
      $region11: #{tpu_custom_call.1} parent=5 // pred_region
        %s122 = ssub.s32 %s14, 1
        // Predicated region
        $region13: #{tpu_custom_call.1} parent=11 // pred_check
          %p123 = pneg %p80
        $region14: #{tpu_custom_call.1} parent=11 // pred_check_branch
          %125 = sbr.rel (%p123) target = $region16
        $region15: #{tpu_custom_call.1} parent=11 // pred_region
          %s126 = smul.u32 2, %s23
          %s127 = ssub.s32 1, %s126
          %s128 = smul.u32 64, %s127
          %p129 = scmp.lt.s32.totalorder %s126, 0
          %s130 = scalar_select %p129, %s126, 0
          %s131 = smul.addr %s130, 4
          %s132 = scalar_lea.vmem %s1, %s131
          %s133 = smul.u32 2, %s23
          %s134 = ssub.s32 1, %s133
          %s135 = smul.u32 64, %s134
        $region16: #{tpu_custom_call.1} parent=11 // pred_fallthru
          _
      $region12: #{tpu_custom_call.1} parent=5 // pred_fallthru
        _
      %p136 = scmp.lt.s32.totalorder %s14, 2
      // Predicated region
      $region17: #{tpu_custom_call.1} parent=5 // pred_check
        %p137 = pneg %p136
      $region18: #{tpu_custom_call.1} parent=5 // pred_check_branch
        %139 = sbr.rel (%p137) target = $region20
      $region19: #{tpu_custom_call.1} parent=5 // pred_region
        // Predicated region
        $region21: #{tpu_custom_call.1} parent=19 // pred_check
          %p140 = pneg %p48
        $region22: #{tpu_custom_call.1} parent=19 // pred_check_branch
          %142 = sbr.rel (%p140) target = $region24
        $region23: #{tpu_custom_call.1} parent=19 // pred_region
          %s143 = sand.u32 %s38, 1
          %s144 = scalar_lea.sflag [#allocation3], %s143
          %s145 = sand.u32 %s38, 1
          %s146 = smul.addr %s145, 8
          %s147 = scalar_lea.vmem [#allocation2], %s146
          %s148 = smul.u32 4, %s21
          %s149 = ssub.s32 1, %s148
          %s150 = smul.u32 32, %s149
          %s152 = ssub.s32 128, %s150
          %153 = vsyncadd %s144, %s152
          %p154 = scmp.ne.s32.totalorder 0, %s150
          %s155 = sadd.s32 %s148, %s22
          %s156 = smul.addr %s155, 32
          %s157 = scalar_lea.hbm %s0, %s156
          %s158 = smul.u32 2, %s149
          %s159 = sshll.u32 %s147, 4
          %s160 = int_to_ptr.vmem [resolvable:$true] %s159
          %s161 = sshll.u32 %s158, 4
          %165 = dma.hbm_to_vmem [thread:$0]  (%p154), %s157, %s161, %s160, %s144, 32, 32, 2
        $region24: #{tpu_custom_call.1} parent=19 // pred_fallthru
          _
      $region20: #{tpu_custom_call.1} parent=5 // pred_fallthru
        _
      %p166 = scmp.le.s32.totalorder 1, %s14
      %p167 = scmp.lt.s32.totalorder %s14, 3
      %p168 = pnand %p166, %p167
      %p169 = pneg %p168
      // Predicated region
      $region25: #{tpu_custom_call.1} parent=5 // pred_check
        _
      $region26: #{tpu_custom_call.1} parent=5 // pred_check_branch
        %171 = sbr.rel (%p168) target = $region28
      $region27: #{tpu_custom_call.1} parent=5 // pred_region
        %s172 = ssub.s32 %s14, 1
        %s173 = sand.u32 %s41, 1
        %s174 = scalar_lea.sflag [#allocation3], %s173
        %s175 = sand.u32 %s41, 1
        %s176 = smul.addr %s175, 8
        %s177 = scalar_lea.vmem [#allocation2], %s176
        // Predicated region
        $region29: #{tpu_custom_call.1} parent=27 // pred_check
          %p178 = pneg %p54
        $region30: #{tpu_custom_call.1} parent=27 // pred_check_branch
          %180 = sbr.rel (%p178) target = $region32
        $region31: #{tpu_custom_call.1} parent=27 // pred_region
          %181 = dma.done %s174, 128
        $region32: #{tpu_custom_call.1} parent=27 // pred_fallthru
          _
        %s182 = sand.u32 %s41, 1
        %s183 = scalar_lea.sflag [#allocation3], %s182
        %s184 = sand.u32 %s41, 1
        %s185 = smul.addr %s184, 8
        %s186 = scalar_lea.vmem [#allocation2], %s185
        %p187 = pneg %p54
        %p188 = pneg %p51
        %s189 = smul.u32 2, %s23
        %s190 = ssub.s32 1, %s189
        %s191 = smul.u32 64, %s190
        %p192 = scmp.lt.s32.totalorder %s189, 0
        %s193 = scalar_select %p192, %s189, 0
        %s194 = smul.addr %s193, 4
        %s195 = scalar_lea.vmem %s1, %s194
        %p196 = pneg %p80
        %p197 = pneg %p77
        %p198 = pneg %p108
        %p199 = pneg %p105
        %s200 = sand.u32 %s95, 1
        %s201 = scalar_lea.sflag [#allocation4], %s200
        %s202 = sand.u32 %s95, 1
        %s203 = smul.addr %s202, 8
        %s204 = scalar_lea.vmem [#allocation5], %s203
        %s205 = smul.u32 4, %s23
        %s206 = ssub.s32 1, %s205
        %s207 = smul.u32 32, %s206
        %s208 = smul.u32 2, %s23
        %s209 = ssub.s32 1, %s208
        %s210 = smul.u32 64, %s209
        %p211 = scmp.lt.s32.totalorder %s208, 0
        %s212 = scalar_select %p211, %s208, 0
        %s213 = smul.addr %s212, 4
        %s214 = scalar_lea.vmem %s1, %s213
        %s215 = smul.u32 2, %s23
        %s216 = ssub.s32 1, %s215
        %s217 = smul.u32 64, %s216
        %s218 = smul.u32 4, %s23
        %s219 = ssub.s32 1, %s218
        %s220 = smul.u32 32, %s219
        %v221 = vld [vmem:[%s177] sm:$0xff]
        %v222 = vld [vmem:[%s214] sm:$0xff]
        %v223 = vadd.f32 %v221, %v222
        %224 = vst [vmem:[%s204] sm:$0xff] %v223
        %s225 = sand.u32 %s95, 1
        %s226 = scalar_lea.sflag [#allocation4], %s225
        %s227 = sand.u32 %s95, 1
        %s228 = smul.addr %s227, 8
        %s229 = scalar_lea.vmem [#allocation5], %s228
        // Predicated region
        $region33: #{tpu_custom_call.1} parent=27 // pred_check
          %p230 = pneg %p105
        $region34: #{tpu_custom_call.1} parent=27 // pred_check_branch
          %232 = sbr.rel (%p230) target = $region36
        $region35: #{tpu_custom_call.1} parent=27 // pred_region
          %s233 = smul.u32 4, %s23
          %s234 = ssub.s32 1, %s233
          %s235 = smul.u32 32, %s234
          %s237 = ssub.s32 128, %s235
          %238 = vsyncadd %s226, %s237
          %p239 = scmp.ne.s32.totalorder 0, %s235
          %s240 = sadd.s32 %s233, %s24
          %s241 = smul.addr %s240, 32
          %s242 = scalar_lea.hbm %s2, %s241
          %s243 = smul.u32 2, %s234
          %s244 = sshll.u32 %s229, 4
          %s245 = int_to_ptr.vmem [resolvable:$true] %s244
          %s246 = sshll.u32 %s243, 4
          %250 = dma.vmem_to_hbm [thread:$0]  (%p239), %s245, %s246, %s242, %s226, 32, 32, 2
        $region36: #{tpu_custom_call.1} parent=27 // pred_fallthru
          _
      $region28: #{tpu_custom_call.1} parent=5 // pred_fallthru
        _
      %p251 = scmp.le.s32.totalorder 2, %s14
      // Predicated region
      $region37: #{tpu_custom_call.1} parent=5 // pred_check
        %p252 = pneg %p251
      $region38: #{tpu_custom_call.1} parent=5 // pred_check_branch
        %254 = sbr.rel (%p252) target = $region40
      $region39: #{tpu_custom_call.1} parent=5 // pred_region
        %s255 = ssub.s32 %s14, 2
        // Predicated region
        $region41: #{tpu_custom_call.1} parent=39 // pred_check
          %p256 = pneg %p111
        $region42: #{tpu_custom_call.1} parent=39 // pred_check_branch
          %258 = sbr.rel (%p256) target = $region44
        $region43: #{tpu_custom_call.1} parent=39 // pred_region
          %s259 = sand.u32 %s96, 1
          %s260 = scalar_lea.sflag [#allocation4], %s259
          %s261 = sand.u32 %s96, 1
          %s262 = smul.addr %s261, 8
          %s263 = scalar_lea.vmem [#allocation5], %s262
          %264 = dma.done %s260, 128
        $region44: #{tpu_custom_call.1} parent=39 // pred_fallthru
          _
      $region40: #{tpu_custom_call.1} parent=5 // pred_fallthru
        _
    $region6: #{tpu_custom_call.1} parent=1 // loop_footer
      %s18 = sadd.s32 1, %s14
    $region7: #{tpu_custom_call.1} parent=1 // loop_footer_branch
      %13 = sbr.rel target = $region3
    $region8: #{tpu_custom_call.1} parent=1 // loop_exit
      _
    %265 = vsyncpa [#allocation3], 1
    %s266 = scalar_lea.sflag [#allocation3], 1
    %267 = vsyncpa %s266, 1
    %268 = vsyncpa [#allocation4], 1
    %s269 = scalar_lea.sflag [#allocation4], 1
    %270 = vsyncpa %s269, 1

</llo_original>
